<compile_context>
chip_gen: v7x
topology: tpu7x:2x2x1
jax: 0.10.0
libtpu: 0.0.40
codegen_flags: <defaults>
</compile_context>

<pallas_src>
import functools

import jax
import jax.numpy as jnp
from jax.experimental import pallas as pl
from jax.experimental.pallas import tpu as pltpu


def _round_up(x, n):
    return ((x + n - 1) // n) * n


def _pick_row_tiling(m):
    """Pick (row_tile, num_grid_steps).

    Small m: one big tile -> a single grid step, no per-step overhead.
    Large m: an even number of steps (>= 2) so v7x megacore can shard row
    tiles across both TensorCores, with each tile capped at 2048 rows so
    double-buffered tiles + f32 accumulators stay far under v5e's scoped-VMEM
    budget.
    """
    TM_MAX = 2048          # per-tile row cap (VMEM-safe on all generations)
    SINGLE_TILE_MAX = 512  # below this, one grid step is strictly best
    m8 = _round_up(max(m, 8), 8)
    if m8 <= SINGLE_TILE_MAX:
        return m8, 1
    n_steps = max(2, pl.cdiv(m8, TM_MAX))
    n_steps = _round_up(n_steps, 2)          # even -> balanced megacore split
    tm = _round_up(pl.cdiv(m8, n_steps), 8)  # multiple of 8 (sublane tiling)
    return tm, n_steps


def _generator_mlp_kernel(nz_ref, w1_ref, b1_ref, w2_ref, b2_ref,
                          w3_ref, b3_ref, o_ref, *, hidden_layer_num):
    """Whole MLP hot path for one tile of `market` rows, entirely in VMEM.

    Weights and nz are bf16; MXU accumulation, bias-add and ReLU are f32;
    inter-layer activations are stored bf16 (cast right after each ReLU,
    which is bit-identical to casting at the next dot's input).
    """
    b1 = b1_ref[...]  # (1, hidden) f32 rows; broadcast-add is a cheap
    b2 = b2_ref[...]  # sublane replicate (no (tm, hidden) buffer).
    b3 = b3_ref[...]

    # dense1 + ReLU
    x = jnp.dot(nz_ref[...], w1_ref[...], preferred_element_type=jnp.float32)
    x = jnp.maximum(x + b1, 0.0).astype(jnp.bfloat16)

    # dense2 + ReLU, applied `hidden_layer_num` times (same weights each time,
    # exactly as the PyTorch loop re-uses self.dense2).
    for _ in range(hidden_layer_num):
        x = jnp.dot(x, w2_ref[...], preferred_element_type=jnp.float32)
        x = jnp.maximum(x + b2, 0.0).astype(jnp.bfloat16)

    # dense3 (no activation). Output block is (tm, pnl_size): only real bytes
    # are written back to a contiguous HBM buffer.
    out = jnp.dot(x, w3_ref[...], preferred_element_type=jnp.float32)
    o_ref[...] = (out + b3).astype(o_ref.dtype)


def generator_forward(nz, params, *, hidden_layer_num=3):
    """Runs the Generator MLP on TPU via a single fused Pallas kernel.

    nz:      [market_size, noise_size] float
    params:  dict with w1 [noise,256], b1 [1,256], w2 [256,256], b2 [1,256],
             w3 [256,pnl], b3 [1,pnl]  (any float dtype; cast internally)
    returns: [market_size, pnl_size] float32
    """
    w1, b1 = params["w1"], params["b1"]
    w2, b2 = params["w2"], params["b2"]
    w3, b3 = params["w3"], params["b3"]

    m, noise_size = nz.shape
    hidden = w1.shape[1]
    pnl_size = w3.shape[1]

    # ---- Row tiling --------------------------------------------------------
    tm, n_steps = _pick_row_tiling(m)
    m_pad = tm * n_steps

    # ---- bf16 matmul operands (accumulation stays f32 in the kernel) -------
    nz = nz.astype(jnp.bfloat16)          # halves the nz HBM->VMEM DMA
    if m_pad != m:
        nz = jnp.pad(nz, ((0, m_pad - m), (0, 0)))
    w1 = w1.astype(jnp.bfloat16)
    w2 = w2.astype(jnp.bfloat16)
    w3 = w3.astype(jnp.bfloat16)
    b1 = b1.astype(jnp.float32)
    b2 = b2.astype(jnp.float32)
    b3 = b3.astype(jnp.float32)

    kernel = functools.partial(_generator_mlp_kernel,
                               hidden_layer_num=hidden_layer_num)

    out = pl.pallas_call(
        kernel,
        out_shape=jax.ShapeDtypeStruct((m_pad, pnl_size), jnp.float32),
        grid_spec=pltpu.PrefetchScalarGridSpec(
            num_scalar_prefetch=0,
            grid=(n_steps,),
            in_specs=[
                pl.BlockSpec((tm, noise_size), lambda i: (i, 0)),      # nz tile
                pl.BlockSpec((noise_size, hidden), lambda i: (0, 0)),  # W1
                pl.BlockSpec((1, hidden), lambda i: (0, 0)),           # b1
                pl.BlockSpec((hidden, hidden), lambda i: (0, 0)),      # W2
                pl.BlockSpec((1, hidden), lambda i: (0, 0)),           # b2
                pl.BlockSpec((hidden, pnl_size), lambda i: (0, 0)),    # W3
                pl.BlockSpec((1, pnl_size), lambda i: (0, 0)),         # b3
            ],
            out_specs=pl.BlockSpec((tm, pnl_size), lambda i: (i, 0)),
        ),
        compiler_params=pltpu.CompilerParams(
            dimension_semantics=("parallel",),       # row tiles are independent
            vmem_limit_bytes=32 * 1024 * 1024,       # headroom for 2048-row tiles
        ),
    )(nz, w1, b1, w2, b2, w3, b3)

    if m_pad != m:
        out = out[:m]
    return out


def init_params(key, noise_size, pnl_size, hidden=256):
    """Deterministic PyTorch-Linear-style init: U(-1/sqrt(fan_in), 1/sqrt(fan_in))."""
    ks = jax.random.split(key, 6)

    def linear(kw, kb, fan_in, fan_out):
        bound = 1.0 / jnp.sqrt(jnp.float32(fan_in))
        w = jax.random.uniform(kw, (fan_in, fan_out), jnp.float32, -bound, bound)
        b = jax.random.uniform(kb, (1, fan_out), jnp.float32, -bound, bound)
        return w, b

    w1, b1 = linear(ks[0], ks[1], noise_size, hidden)
    w2, b2 = linear(ks[2], ks[3], hidden, hidden)
    w3, b3 = linear(ks[4], ks[5], hidden, pnl_size)
    return dict(w1=w1, b1=b1, w2=w2, b2=b2, w3=w3, b3=b3)


def reference_forward_bf16(nz, params, hidden_layer_num=3):
    """Pure-JAX reference mimicking the kernel's bf16-operand / f32-acc recipe."""
    def mm(a, w):
        return jnp.dot(a.astype(jnp.bfloat16), w.astype(jnp.bfloat16),
                       preferred_element_type=jnp.float32)

    x = jnp.maximum(mm(nz, params["w1"]) + params["b1"], 0.0)
    for _ in range(hidden_layer_num):
        x = jnp.maximum(mm(x, params["w2"]) + params["b2"], 0.0)
    return mm(x, params["w3"]) + params["b3"]


def reference_forward_f32(nz, params, hidden_layer_num=3):
    """Full-precision reference of the original module's forward."""
    x = jnp.maximum(nz @ params["w1"] + params["b1"], 0.0)
    for _ in range(hidden_layer_num):
        x = jnp.maximum(x @ params["w2"] + params["b2"], 0.0)
    return x @ params["w3"] + params["b3"]


if __name__ == "__main__":
    # Small, deterministic problem sizes consistent with the module.
    noise_size = 32
    pnl_size = 16
    market_size = 8
    mean, std = 0.0, 1.0

    key = jax.random.PRNGKey(0)
    k_noise, k_params, k_noise2 = jax.random.split(key, 3)

    # The Generator's gaussian noise input, generated deterministically.
    nz = mean + std * jax.random.normal(
        k_noise, (market_size, noise_size), dtype=jnp.float32)

    params = init_params(k_params, noise_size, pnl_size)

    # ---- single-tile path (market_size=8) ----------------------------------
    out = generator_forward(nz, params, hidden_layer_num=3)
    out = jax.block_until_ready(out)
    assert out.shape == (market_size, pnl_size)
    assert bool(jnp.all(jnp.isfinite(out)))

    # Tight check vs a bf16-operand reference (same precision recipe as kernel).
    ref_bf16 = reference_forward_bf16(nz, params, hidden_layer_num=3)
    assert jnp.allclose(out, ref_bf16, atol=1e-2, rtol=1e-2)

    # Loose check vs the full-f32 PyTorch-equivalent forward.
    ref_f32 = reference_forward_f32(nz, params, hidden_layer_num=3)
    assert jnp.allclose(out, ref_f32, atol=5e-2, rtol=5e-2)

    # ---- multi-tile path (exercises the >=2-step grid + row padding) -------
    m_big = 1201   # -> 2 grid steps, tm=608, 15 padded rows
    nz_big = mean + std * jax.random.normal(
        k_noise2, (m_big, noise_size), dtype=jnp.float32)
    out_big = jax.block_until_ready(
        generator_forward(nz_big, params, hidden_layer_num=3))
    assert out_big.shape == (m_big, pnl_size)
    ref_big = reference_forward_bf16(nz_big, params, hidden_layer_num=3)
    assert jnp.allclose(out_big, ref_big, atol=1e-2, rtol=1e-2)

    print("KERNEL_OK")
</pallas_src>

<mosaic_0001>
module attributes {stable_mosaic.version = 11 : i64} {
  func.func @_generator_mlp_kernel(%arg0: i32, %arg1: memref<8x32xbf16, #tpu.memory_space<vmem>>, %arg2: memref<32x256xbf16, #tpu.memory_space<vmem>>, %arg3: memref<1x256xf32, #tpu.memory_space<vmem>>, %arg4: memref<256x256xbf16, #tpu.memory_space<vmem>>, %arg5: memref<1x256xf32, #tpu.memory_space<vmem>>, %arg6: memref<256x16xbf16, #tpu.memory_space<vmem>>, %arg7: memref<1x16xf32, #tpu.memory_space<vmem>>, %arg8: memref<8x16xf32, #tpu.memory_space<vmem>>) attributes {dimension_semantics = [#tpu.dimension_semantics<parallel>], iteration_bounds = array<i64: 1>, scalar_prefetch = 0 : i64, scratch_operands = 0 : i64, tpu.core_type = #tpu.core_type<tc>, window_params = [{transform_indices = @transform_0, window_bounds = array<i64: 8, 32>}, {pipeline_mode = #tpu.pipeline_mode<synchronous>, transform_indices = @transform_1, window_bounds = array<i64: 32, 256>}, {pipeline_mode = #tpu.pipeline_mode<synchronous>, transform_indices = @transform_2, window_bounds = array<i64: 1, 256>}, {pipeline_mode = #tpu.pipeline_mode<synchronous>, transform_indices = @transform_3, window_bounds = array<i64: 256, 256>}, {pipeline_mode = #tpu.pipeline_mode<synchronous>, transform_indices = @transform_4, window_bounds = array<i64: 1, 256>}, {pipeline_mode = #tpu.pipeline_mode<synchronous>, transform_indices = @transform_5, window_bounds = array<i64: 256, 16>}, {pipeline_mode = #tpu.pipeline_mode<synchronous>, transform_indices = @transform_6, window_bounds = array<i64: 1, 16>}, {transform_indices = @transform_7, window_bounds = array<i64: 8, 16>}]} {
    %c0 = arith.constant 0 : index
    %c0_0 = arith.constant 0 : index
    %0 = vector.load %arg3[%c0, %c0_0] : memref<1x256xf32, #tpu.memory_space<vmem>>, vector<1x256xf32>
    %c0_1 = arith.constant 0 : index
    %c0_2 = arith.constant 0 : index
    %1 = vector.load %arg5[%c0_1, %c0_2] : memref<1x256xf32, #tpu.memory_space<vmem>>, vector<1x256xf32>
    %c0_3 = arith.constant 0 : index
    %c0_4 = arith.constant 0 : index
    %2 = vector.load %arg7[%c0_3, %c0_4] : memref<1x16xf32, #tpu.memory_space<vmem>>, vector<1x16xf32>
    %c0_5 = arith.constant 0 : index
    %c0_6 = arith.constant 0 : index
    %3 = vector.load %arg1[%c0_5, %c0_6] : memref<8x32xbf16, #tpu.memory_space<vmem>>, vector<8x32xbf16>
    %c0_7 = arith.constant 0 : index
    %c0_8 = arith.constant 0 : index
    %4 = vector.load %arg2[%c0_7, %c0_8] : memref<32x256xbf16, #tpu.memory_space<vmem>>, vector<32x256xbf16>
    %cst = arith.constant dense<0.000000e+00> : vector<8x256xf32>
    %5 = tpu.matmul %3, %4, %cst {dimension_numbers = #tpu.dot_dimension_numbers<[1], [0], [0], [1], [0, 0, 1, 1], [], []>} : vector<8x32xbf16>, vector<32x256xbf16>, vector<8x256xf32> -> vector<8x256xf32>
    %6 = vector.broadcast %0 : vector<1x256xf32> to vector<8x256xf32>
    %7 = arith.addf %5, %6 : vector<8x256xf32>
    %cst_9 = arith.constant 0.000000e+00 : f32
    %8 = vector.broadcast %cst_9 : f32 to vector<8x256xf32>
    %9 = arith.maximumf %7, %8 : vector<8x256xf32>
    %10 = arith.truncf %9 : vector<8x256xf32> to vector<8x256xbf16>
    %c0_10 = arith.constant 0 : index
    %c0_11 = arith.constant 0 : index
    %11 = vector.load %arg4[%c0_10, %c0_11] : memref<256x256xbf16, #tpu.memory_space<vmem>>, vector<256x256xbf16>
    %cst_12 = arith.constant dense<0.000000e+00> : vector<8x256xf32>
    %12 = tpu.matmul %10, %11, %cst_12 {dimension_numbers = #tpu.dot_dimension_numbers<[1], [0], [0], [1], [0, 0, 1, 1], [], []>} : vector<8x256xbf16>, vector<256x256xbf16>, vector<8x256xf32> -> vector<8x256xf32>
    %13 = vector.broadcast %1 : vector<1x256xf32> to vector<8x256xf32>
    %14 = arith.addf %12, %13 : vector<8x256xf32>
    %cst_13 = arith.constant 0.000000e+00 : f32
    %15 = vector.broadcast %cst_13 : f32 to vector<8x256xf32>
    %16 = arith.maximumf %14, %15 : vector<8x256xf32>
    %17 = arith.truncf %16 : vector<8x256xf32> to vector<8x256xbf16>
    %c0_14 = arith.constant 0 : index
    %c0_15 = arith.constant 0 : index
    %18 = vector.load %arg4[%c0_14, %c0_15] : memref<256x256xbf16, #tpu.memory_space<vmem>>, vector<256x256xbf16>
    %cst_16 = arith.constant dense<0.000000e+00> : vector<8x256xf32>
    %19 = tpu.matmul %17, %18, %cst_16 {dimension_numbers = #tpu.dot_dimension_numbers<[1], [0], [0], [1], [0, 0, 1, 1], [], []>} : vector<8x256xbf16>, vector<256x256xbf16>, vector<8x256xf32> -> vector<8x256xf32>
    %20 = vector.broadcast %1 : vector<1x256xf32> to vector<8x256xf32>
    %21 = arith.addf %19, %20 : vector<8x256xf32>
    %cst_17 = arith.constant 0.000000e+00 : f32
    %22 = vector.broadcast %cst_17 : f32 to vector<8x256xf32>
    %23 = arith.maximumf %21, %22 : vector<8x256xf32>
    %24 = arith.truncf %23 : vector<8x256xf32> to vector<8x256xbf16>
    %c0_18 = arith.constant 0 : index
    %c0_19 = arith.constant 0 : index
    %25 = vector.load %arg4[%c0_18, %c0_19] : memref<256x256xbf16, #tpu.memory_space<vmem>>, vector<256x256xbf16>
    %cst_20 = arith.constant dense<0.000000e+00> : vector<8x256xf32>
    %26 = tpu.matmul %24, %25, %cst_20 {dimension_numbers = #tpu.dot_dimension_numbers<[1], [0], [0], [1], [0, 0, 1, 1], [], []>} : vector<8x256xbf16>, vector<256x256xbf16>, vector<8x256xf32> -> vector<8x256xf32>
    %27 = vector.broadcast %1 : vector<1x256xf32> to vector<8x256xf32>
    %28 = arith.addf %26, %27 : vector<8x256xf32>
    %cst_21 = arith.constant 0.000000e+00 : f32
    %29 = vector.broadcast %cst_21 : f32 to vector<8x256xf32>
    %30 = arith.maximumf %28, %29 : vector<8x256xf32>
    %31 = arith.truncf %30 : vector<8x256xf32> to vector<8x256xbf16>
    %c0_22 = arith.constant 0 : index
    %c0_23 = arith.constant 0 : index
    %32 = vector.load %arg6[%c0_22, %c0_23] : memref<256x16xbf16, #tpu.memory_space<vmem>>, vector<256x16xbf16>
    %cst_24 = arith.constant dense<0.000000e+00> : vector<8x16xf32>
    %33 = tpu.matmul %31, %32, %cst_24 {dimension_numbers = #tpu.dot_dimension_numbers<[1], [0], [0], [1], [0, 0, 1, 1], [], []>} : vector<8x256xbf16>, vector<256x16xbf16>, vector<8x16xf32> -> vector<8x16xf32>
    %34 = vector.broadcast %2 : vector<1x16xf32> to vector<8x16xf32>
    %35 = arith.addf %33, %34 : vector<8x16xf32>
    %c0_25 = arith.constant 0 : index
    %c0_26 = arith.constant 0 : index
    %36 = vector.load %arg8[%c0_25, %c0_26] : memref<8x16xf32, #tpu.memory_space<vmem>>, vector<8x16xf32>
    tpu.vector_store %arg8[%c0_25, %c0_26], %35 {strides = array<i32>} : memref<8x16xf32, #tpu.memory_space<vmem>>, vector<8x16xf32>,
    return
  }
  func.func @transform_0(%arg0: i32) -> (i32, i32) {
    %c0_i32 = arith.constant 0 : i32
    %c0_i32_0 = arith.constant 0 : i32
    return %arg0, %c0_i32 : i32, i32
  }
  func.func @transform_1(%arg0: i32) -> (i32, i32) {
    %c0_i32 = arith.constant 0 : i32
    %c0_i32_0 = arith.constant 0 : i32
    %c0_i32_1 = arith.constant 0 : i32
    return %c0_i32, %c0_i32_0 : i32, i32
  }
  func.func @transform_2(%arg0: i32) -> (i32, i32) {
    %c0_i32 = arith.constant 0 : i32
    %c0_i32_0 = arith.constant 0 : i32
    %c0_i32_1 = arith.constant 0 : i32
    return %c0_i32, %c0_i32_0 : i32, i32
  }
  func.func @transform_3(%arg0: i32) -> (i32, i32) {
    %c0_i32 = arith.constant 0 : i32
    %c0_i32_0 = arith.constant 0 : i32
    %c0_i32_1 = arith.constant 0 : i32
    return %c0_i32, %c0_i32_0 : i32, i32
  }
  func.func @transform_4(%arg0: i32) -> (i32, i32) {
    %c0_i32 = arith.constant 0 : i32
    %c0_i32_0 = arith.constant 0 : i32
    %c0_i32_1 = arith.constant 0 : i32
    return %c0_i32, %c0_i32_0 : i32, i32
  }
  func.func @transform_5(%arg0: i32) -> (i32, i32) {
    %c0_i32 = arith.constant 0 : i32
    %c0_i32_0 = arith.constant 0 : i32
    %c0_i32_1 = arith.constant 0 : i32
    return %c0_i32, %c0_i32_0 : i32, i32
  }
  func.func @transform_6(%arg0: i32) -> (i32, i32) {
    %c0_i32 = arith.constant 0 : i32
    %c0_i32_0 = arith.constant 0 : i32
    %c0_i32_1 = arith.constant 0 : i32
    return %c0_i32, %c0_i32_0 : i32, i32
  }
  func.func @transform_7(%arg0: i32) -> (i32, i32) {
    %c0_i32 = arith.constant 0 : i32
    %c0_i32_0 = arith.constant 0 : i32
    return %arg0, %c0_i32 : i32, i32
  }
}

</mosaic_0001>

<llo_original>
// kernel: tpu_custom_call.1
$region0: #{tpu_custom_call.1}
  #allocation0 [shape = 'u32[]', space=smem, size = 0x4, offset = 0x4, fixed_abs, tag = 'smem constant byte address 0x4 - core index']
  #allocation1 [shape = 'u32[144,128]{1,0:T(1,128)}', space=vmem, size = 0x12000, scoped, tag = 'internal scratch']
  %s0 = inlined_call_operand.vmem [shape: bf16[8,32], index: 0, kind: input, shape index: {}]
  %s1 = inlined_call_operand.vmem [shape: bf16[32,256], index: 1, kind: input, shape index: {}]
  %s2 = inlined_call_operand.vmem [shape: f32[1,256], index: 2, kind: input, shape index: {}]
  %s3 = inlined_call_operand.hbm [shape: bf16[256,256], index: 3, kind: input, shape index: {}]
  %s4 = inlined_call_operand.vmem [shape: f32[1,256], index: 4, kind: input, shape index: {}]
  %s5 = inlined_call_operand.vmem [shape: bf16[256,16], index: 5, kind: input, shape index: {}]
  %s6 = inlined_call_operand.vmem [shape: f32[1,16], index: 6, kind: input, shape index: {}]
  %s7 = inlined_call_operand.hbm [shape: f32[8,16], index: 7, kind: output, shape index: {}]
  %s8 = sld [smem:[#allocation0]]
  $region42: #{tpu_custom_call.1} parent=0
    _
  %s10 = ssub.s32 1, %s8
  %s11 = scalar_select 0, %s10, %s8
  $region1: #{tpu_custom_call.1} parent=0
    #allocation2 [shape = 'u8[131072]{0}', space=vmem, size = 0x20000, scoped, tag = 'input window, operand 3, single buffered']
    #allocation3 [shape = 's32[1]{0}', space=sflag, size = 0x4, scoped, tag = 'scoped memory for tpu_custom_call.1']
    #allocation4 [shape = 's32[1]{0}', space=sflag, size = 0x4, scoped, tag = 'scoped memory for tpu_custom_call.1']
    #allocation5 [shape = 'u8[4096]{0}', space=vmem, size = 0x1000, scoped, tag = 'output window, operand 0, single buffered']
    %12 = vsyncpa [#allocation3], 0
    %13 = vsyncpa [#allocation4], 0
    // Predicated region
    $region2: #{tpu_custom_call.1} parent=1 // pred_check
      _
    $region3: #{tpu_custom_call.1} parent=1 // pred_check_branch
      %15 = sbr.rel (0) target = $region5
    $region4: #{tpu_custom_call.1} parent=1 // pred_region
      _
    $region5: #{tpu_custom_call.1} parent=1 // pred_fallthru
      _
    // Predicated region
    $region6: #{tpu_custom_call.1} parent=1 // pred_check
      _
    $region7: #{tpu_custom_call.1} parent=1 // pred_check_branch
      %17 = sbr.rel (0) target = $region9
    $region8: #{tpu_custom_call.1} parent=1 // pred_region
      _
    $region9: #{tpu_custom_call.1} parent=1 // pred_fallthru
      _
    // Predicated region
    $region10: #{tpu_custom_call.1} parent=1 // pred_check
      _
    $region11: #{tpu_custom_call.1} parent=1 // pred_check_branch
      %19 = sbr.rel (0) target = $region13
    $region12: #{tpu_custom_call.1} parent=1 // pred_region
      _
    $region13: #{tpu_custom_call.1} parent=1 // pred_fallthru
      _
    // Predicated region
    $region14: #{tpu_custom_call.1} parent=1 // pred_check
      _
    $region15: #{tpu_custom_call.1} parent=1 // pred_check_branch
      %21 = sbr.rel (0) target = $region17
    $region16: #{tpu_custom_call.1} parent=1 // pred_region
      %s23 = ssub.s32 4096, 4096
      %24 = vsyncadd [#allocation3], %s23
      %s25 = sshll.u32 [#allocation2], 4
      %s26 = int_to_ptr.vmem [resolvable:$true] %s25
      %31 = dma.hbm_to_vmem [thread:$0]  %s3, 4096, %s26, [#allocation3], 128, 128, 8
    $region17: #{tpu_custom_call.1} parent=1 // pred_fallthru
      _
    // Predicated region
    $region18: #{tpu_custom_call.1} parent=1 // pred_check
      _
    $region19: #{tpu_custom_call.1} parent=1 // pred_check_branch
      %33 = sbr.rel (0) target = $region21
    $region20: #{tpu_custom_call.1} parent=1 // pred_region
      _
    $region21: #{tpu_custom_call.1} parent=1 // pred_fallthru
      _
    // Predicated region
    $region22: #{tpu_custom_call.1} parent=1 // pred_check
      _
    $region23: #{tpu_custom_call.1} parent=1 // pred_check_branch
      %35 = sbr.rel (0) target = $region25
    $region24: #{tpu_custom_call.1} parent=1 // pred_region
      _
    $region25: #{tpu_custom_call.1} parent=1 // pred_fallthru
      _
    // Predicated region
    $region26: #{tpu_custom_call.1} parent=1 // pred_check
      _
    $region27: #{tpu_custom_call.1} parent=1 // pred_check_branch
      %37 = sbr.rel (0) target = $region29
    $region28: #{tpu_custom_call.1} parent=1 // pred_region
      _
    $region29: #{tpu_custom_call.1} parent=1 // pred_fallthru
      _
    // Predicated region
    $region30: #{tpu_custom_call.1} parent=1 // pred_check
      _
    $region31: #{tpu_custom_call.1} parent=1 // pred_check_branch
      %39 = sbr.rel (0) target = $region33
    $region32: #{tpu_custom_call.1} parent=1 // pred_region
      %40 = dma.done [#allocation3], 4096
    $region33: #{tpu_custom_call.1} parent=1 // pred_fallthru
      _
    %v42 = vld [vmem:[%s2] sm:$0x3]
    %v43 = vld [vmem:[%s4] sm:$0x3]
    %v44 = vld [vmem:[%s6] sm:$0x1]
    %v45 = vld [vmem:[%s0] sm:$0xf]
    %v46 = vld [vmem:[%s1] sm:$0xff]
    %v47 = vld [vmem:[%s1 + $0x8] sm:$0xff]
    %v48 = vld [vmem:[%s1 + $0x10] sm:$0xff]
    %v49 = vld [vmem:[%s1 + $0x18] sm:$0xff]
    %v51 = vlaneseq
    %v52 = vshrl.u32 %v51, 7
    %v53 = vsub.s32 0, %v52
    %v54 = vrot.slane %v42, %v53
    %v55 = vlaneseq
    %v56 = vshrl.u32 %v55, 7
    %v57 = vsub.s32 1, %v56
    %v58 = vrot.slane %v42, %v57
    %v65 = vunpack.c.l.b16 %v46
    %v66 = vunpack.c.h.b16 %v46
    %v67 = vunpack.c.l.b16 %v47
    %v68 = vunpack.c.h.b16 %v47
    %v69 = vunpack.c.l.b16 %v48
    %v70 = vunpack.c.h.b16 %v48
    %v71 = vunpack.c.l.b16 %v49
    %v72 = vunpack.c.h.b16 %v49
    %v73 = vpack.c.b16 %v67, %v65
    %v74 = vpack.c.b16 %v68, %v66
    %v75 = vpack.c.b16 %v71, %v69
    %v76 = vpack.c.b16 %v72, %v70
    %vm81 = vcmask 261120
    %v83 = vsel %vm81, %v45, 0
    %85 = vmatprep.subr.bf16.mxu0 %v74
    %86 = vmatpush1.bf16.msra.mxu0 %v73
    %87 = vmatprep.subr.bf16.mxu0 %v76
    %88 = vmatpush1.bf16.msra.mxu0 %v75
    %89 = vmatprep.subr.bf16.mxu0 0
    %90 = vmatpush1.bf16.msra.mxu0 0
    %91 = vmatprep.subr.bf16.mxu0 0
    %92 = vmatpush1.bf16.msra.mxu0 0
    %93 = vmatprep.subr.bf16.mxu0 0
    %94 = vmatpush1.bf16.msra.mxu0 0
    %95 = vmatprep.subr.bf16.mxu0 0
    %96 = vmatpush1.bf16.msra.mxu0 0
    %97 = vmatprep.subr.bf16.mxu0 0
    %98 = vmatpush1.bf16.msra.mxu0 0
    %99 = vmatprep.subr.bf16.mxu0 0
    %100 = vmatpush1.bf16.msra.mxu0 0
    %101 = vmatprep.subr.bf16.mxu0 0
    %102 = vmatpush1.bf16.msra.mxu0 0
    %103 = vmatprep.subr.bf16.mxu0 0
    %104 = vmatpush1.bf16.msra.mxu0 0
    %105 = vmatprep.subr.bf16.mxu0 0
    %106 = vmatpush1.bf16.msra.mxu0 0
    %107 = vmatprep.subr.bf16.mxu0 0
    %108 = vmatpush1.bf16.msra.mxu0 0
    %109 = vmatprep.subr.bf16.mxu0 0
    %110 = vmatpush1.bf16.msra.mxu0 0
    %111 = vmatprep.subr.bf16.mxu0 0
    %112 = vmatpush1.bf16.msra.mxu0 0
    %113 = vmatprep.subr.bf16.mxu0 0
    %114 = vmatpush1.bf16.msra.mxu0 0
    %115 = vmatprep.subr.bf16.mxu0 0
    %116 = vmatpush1.bf16.msra.mxu0 0
    %117 = vmatprep.mubr.bf16.mxu0 0
    %118 = vmatmul.mubr.bf16.gmra.mrb[0].mxu0 %v83
    %v119 = vpop.f32.mrb[0].mxu0
    %v120 = vadd.f32 %v54, %v119
    %v121 = vpop.f32.mrb[0].mxu0
    %v122 = vadd.f32 %v58, %v121
    %v123 = vpop.f32.mrb[0].mxu0
    %v124 = vpop.f32.mrb[0].mxu0
    %125 = vdwg.mxu0
    %v126 = vmax.f32 %v120, 0.0
    %v127 = vmax.f32 %v122, 0.0
    %v128 = vpack.c.bf16 %v126, %v126
    %v129 = vpack.c.bf16 %v127, %v127
    %v130 = vld [vmem:[#allocation2] sm:$0xff]
    %v131 = vld [vmem:[#allocation2 + $0x8] sm:$0xff]
    %v132 = vld [vmem:[#allocation2 + $0x10] sm:$0xff]
    %v133 = vld [vmem:[#allocation2 + $0x18] sm:$0xff]
    %v134 = vld [vmem:[#allocation2 + $0x20] sm:$0xff]
    %v135 = vld [vmem:[#allocation2 + $0x28] sm:$0xff]
    %v136 = vld [vmem:[#allocation2 + $0x30] sm:$0xff]
    %v137 = vld [vmem:[#allocation2 + $0x38] sm:$0xff]
    %v138 = vld [vmem:[#allocation2 + $0x40] sm:$0xff]
    %v139 = vld [vmem:[#allocation2 + $0x48] sm:$0xff]
    %v140 = vld [vmem:[#allocation2 + $0x50] sm:$0xff]
    %v141 = vld [vmem:[#allocation2 + $0x58] sm:$0xff]
    %v142 = vld [vmem:[#allocation2 + $0x60] sm:$0xff]
    %v143 = vld [vmem:[#allocation2 + $0x68] sm:$0xff]
    %v144 = vld [vmem:[#allocation2 + $0x70] sm:$0xff]
    %v145 = vld [vmem:[#allocation2 + $0x78] sm:$0xff]
    %v146 = vld [vmem:[#allocation2 + $0x80] sm:$0xff]
    %v147 = vld [vmem:[#allocation2 + $0x88] sm:$0xff]
    %v148 = vld [vmem:[#allocation2 + $0x90] sm:$0xff]
    %v149 = vld [vmem:[#allocation2 + $0x98] sm:$0xff]
    %v150 = vld [vmem:[#allocation2 + $0xa0] sm:$0xff]
    %v151 = vld [vmem:[#allocation2 + $0xa8] sm:$0xff]
    %v152 = vld [vmem:[#allocation2 + $0xb0] sm:$0xff]
    %v153 = vld [vmem:[#allocation2 + $0xb8] sm:$0xff]
    %v154 = vld [vmem:[#allocation2 + $0xc0] sm:$0xff]
    %v155 = vld [vmem:[#allocation2 + $0xc8] sm:$0xff]
    %v156 = vld [vmem:[#allocation2 + $0xd0] sm:$0xff]
    %v157 = vld [vmem:[#allocation2 + $0xd8] sm:$0xff]
    %v158 = vld [vmem:[#allocation2 + $0xe0] sm:$0xff]
    %v159 = vld [vmem:[#allocation2 + $0xe8] sm:$0xff]
    %v160 = vld [vmem:[#allocation2 + $0xf0] sm:$0xff]
    %v161 = vld [vmem:[#allocation2 + $0xf8] sm:$0xff]
    %v163 = vlaneseq
    %v164 = vshrl.u32 %v163, 7
    %v165 = vsub.s32 0, %v164
    %v166 = vrot.slane %v43, %v165
    %v167 = vlaneseq
    %v168 = vshrl.u32 %v167, 7
    %v169 = vsub.s32 1, %v168
    %v170 = vrot.slane %v43, %v169
    %v205 = vunpack.c.l.b16 %v130
    %v206 = vunpack.c.h.b16 %v130
    %v207 = vunpack.c.l.b16 %v131
    %v208 = vunpack.c.h.b16 %v131
    %v209 = vunpack.c.l.b16 %v132
    %v210 = vunpack.c.h.b16 %v132
    %v211 = vunpack.c.l.b16 %v133
    %v212 = vunpack.c.h.b16 %v133
    %v213 = vunpack.c.l.b16 %v134
    %v214 = vunpack.c.h.b16 %v134
    %v215 = vunpack.c.l.b16 %v135
    %v216 = vunpack.c.h.b16 %v135
    %v217 = vunpack.c.l.b16 %v136
    %v218 = vunpack.c.h.b16 %v136
    %v219 = vunpack.c.l.b16 %v137
    %v220 = vunpack.c.h.b16 %v137
    %v221 = vunpack.c.l.b16 %v138
    %v222 = vunpack.c.h.b16 %v138
    %v223 = vunpack.c.l.b16 %v139
    %v224 = vunpack.c.h.b16 %v139
    %v225 = vunpack.c.l.b16 %v140
    %v226 = vunpack.c.h.b16 %v140
    %v227 = vunpack.c.l.b16 %v141
    %v228 = vunpack.c.h.b16 %v141
    %v229 = vunpack.c.l.b16 %v142
    %v230 = vunpack.c.h.b16 %v142
    %v231 = vunpack.c.l.b16 %v143
    %v232 = vunpack.c.h.b16 %v143
    %v233 = vunpack.c.l.b16 %v144
    %v234 = vunpack.c.h.b16 %v144
    %v235 = vunpack.c.l.b16 %v145
    %v236 = vunpack.c.h.b16 %v145
    %v237 = vunpack.c.l.b16 %v146
    %v238 = vunpack.c.h.b16 %v146
    %v239 = vunpack.c.l.b16 %v147
    %v240 = vunpack.c.h.b16 %v147
    %v241 = vunpack.c.l.b16 %v148
    %v242 = vunpack.c.h.b16 %v148
    %v243 = vunpack.c.l.b16 %v149
    %v244 = vunpack.c.h.b16 %v149
    %v245 = vunpack.c.l.b16 %v150
    %v246 = vunpack.c.h.b16 %v150
    %v247 = vunpack.c.l.b16 %v151
    %v248 = vunpack.c.h.b16 %v151
    %v249 = vunpack.c.l.b16 %v152
    %v250 = vunpack.c.h.b16 %v152
    %v251 = vunpack.c.l.b16 %v153
    %v252 = vunpack.c.h.b16 %v153
    %v253 = vunpack.c.l.b16 %v154
    %v254 = vunpack.c.h.b16 %v154
    %v255 = vunpack.c.l.b16 %v155
    %v256 = vunpack.c.h.b16 %v155
    %v257 = vunpack.c.l.b16 %v156
    %v258 = vunpack.c.h.b16 %v156
    %v259 = vunpack.c.l.b16 %v157
    %v260 = vunpack.c.h.b16 %v157
    %v261 = vunpack.c.l.b16 %v158
    %v262 = vunpack.c.h.b16 %v158
    %v263 = vunpack.c.l.b16 %v159
    %v264 = vunpack.c.h.b16 %v159
    %v265 = vunpack.c.l.b16 %v160
    %v266 = vunpack.c.h.b16 %v160
    %v267 = vunpack.c.l.b16 %v161
    %v268 = vunpack.c.h.b16 %v161
    %v269 = vpack.c.b16 %v207, %v205
    %v270 = vpack.c.b16 %v208, %v206
    %v271 = vpack.c.b16 %v211, %v209
    %v272 = vpack.c.b16 %v212, %v210
    %v273 = vpack.c.b16 %v215, %v213
    %v274 = vpack.c.b16 %v216, %v214
    %v275 = vpack.c.b16 %v219, %v217
    %v276 = vpack.c.b16 %v220, %v218
    %v277 = vpack.c.b16 %v223, %v221
    %v278 = vpack.c.b16 %v224, %v222
    %v279 = vpack.c.b16 %v227, %v225
    %v280 = vpack.c.b16 %v228, %v226
    %v281 = vpack.c.b16 %v231, %v229
    %v282 = vpack.c.b16 %v232, %v230
    %v283 = vpack.c.b16 %v235, %v233
    %v284 = vpack.c.b16 %v236, %v234
    %v285 = vpack.c.b16 %v239, %v237
    %v286 = vpack.c.b16 %v240, %v238
    %v287 = vpack.c.b16 %v243, %v241
    %v288 = vpack.c.b16 %v244, %v242
    %v289 = vpack.c.b16 %v247, %v245
    %v290 = vpack.c.b16 %v248, %v246
    %v291 = vpack.c.b16 %v251, %v249
    %v292 = vpack.c.b16 %v252, %v250
    %v293 = vpack.c.b16 %v255, %v253
    %v294 = vpack.c.b16 %v256, %v254
    %v295 = vpack.c.b16 %v259, %v257
    %v296 = vpack.c.b16 %v260, %v258
    %v297 = vpack.c.b16 %v263, %v261
    %v298 = vpack.c.b16 %v264, %v262
    %v299 = vpack.c.b16 %v267, %v265
    %v300 = vpack.c.b16 %v268, %v266
    %333 = vmatprep.subr.bf16.mxu0 %v270
    %334 = vmatpush1.bf16.msra.mxu0 %v269
    %335 = vmatprep.subr.bf16.mxu0 %v272
    %336 = vmatpush1.bf16.msra.mxu0 %v271
    %337 = vmatprep.subr.bf16.mxu0 %v274
    %338 = vmatpush1.bf16.msra.mxu0 %v273
    %339 = vmatprep.subr.bf16.mxu0 %v276
    %340 = vmatpush1.bf16.msra.mxu0 %v275
    %341 = vmatprep.subr.bf16.mxu0 %v278
    %342 = vmatpush1.bf16.msra.mxu0 %v277
    %343 = vmatprep.subr.bf16.mxu0 %v280
    %344 = vmatpush1.bf16.msra.mxu0 %v279
    %345 = vmatprep.subr.bf16.mxu0 %v282
    %346 = vmatpush1.bf16.msra.mxu0 %v281
    %347 = vmatprep.subr.bf16.mxu0 %v284
    %348 = vmatpush1.bf16.msra.mxu0 %v283
    %349 = vmatprep.subr.bf16.mxu0 %v286
    %350 = vmatpush1.bf16.msra.mxu0 %v285
    %351 = vmatprep.subr.bf16.mxu0 %v288
    %352 = vmatpush1.bf16.msra.mxu0 %v287
    %353 = vmatprep.subr.bf16.mxu0 %v290
    %354 = vmatpush1.bf16.msra.mxu0 %v289
    %355 = vmatprep.subr.bf16.mxu0 %v292
    %356 = vmatpush1.bf16.msra.mxu0 %v291
    %357 = vmatprep.subr.bf16.mxu0 %v294
    %358 = vmatpush1.bf16.msra.mxu0 %v293
    %359 = vmatprep.subr.bf16.mxu0 %v296
    %360 = vmatpush1.bf16.msra.mxu0 %v295
    %361 = vmatprep.subr.bf16.mxu0 %v298
    %362 = vmatpush1.bf16.msra.mxu0 %v297
    %363 = vmatprep.subr.bf16.mxu0 %v300
    %364 = vmatpush1.bf16.msra.mxu0 %v299
    %365 = vmatprep.mubr.bf16.mxu0 %v129
    %366 = vmatmul.mubr.bf16.gmra.mrb[0].mxu0 %v128
    %v367 = vpop.f32.mrb[0].mxu0
    %v368 = vadd.f32 %v166, %v367
    %v369 = vpop.f32.mrb[0].mxu0
    %v370 = vadd.f32 %v170, %v369
    %v371 = vpop.f32.mrb[0].mxu0
    %v372 = vpop.f32.mrb[0].mxu0
    %373 = vdwg.mxu0
    %v374 = vmax.f32 %v368, 0.0
    %v375 = vmax.f32 %v370, 0.0
    %v376 = vpack.c.bf16 %v374, %v374
    %v377 = vpack.c.bf16 %v375, %v375
    %378 = vmatprep.subr.bf16.mxu0 %v270
    %379 = vmatpush1.bf16.msra.mxu0 %v269
    %380 = vmatprep.subr.bf16.mxu0 %v272
    %381 = vmatpush1.bf16.msra.mxu0 %v271
    %382 = vmatprep.subr.bf16.mxu0 %v274
    %383 = vmatpush1.bf16.msra.mxu0 %v273
    %384 = vmatprep.subr.bf16.mxu0 %v276
    %385 = vmatpush1.bf16.msra.mxu0 %v275
    %386 = vmatprep.subr.bf16.mxu0 %v278
    %387 = vmatpush1.bf16.msra.mxu0 %v277
    %388 = vmatprep.subr.bf16.mxu0 %v280
    %389 = vmatpush1.bf16.msra.mxu0 %v279
    %390 = vmatprep.subr.bf16.mxu0 %v282
    %391 = vmatpush1.bf16.msra.mxu0 %v281
    %392 = vmatprep.subr.bf16.mxu0 %v284
    %393 = vmatpush1.bf16.msra.mxu0 %v283
    %394 = vmatprep.subr.bf16.mxu0 %v286
    %395 = vmatpush1.bf16.msra.mxu0 %v285
    %396 = vmatprep.subr.bf16.mxu0 %v288
    %397 = vmatpush1.bf16.msra.mxu0 %v287
    %398 = vmatprep.subr.bf16.mxu0 %v290
    %399 = vmatpush1.bf16.msra.mxu0 %v289
    %400 = vmatprep.subr.bf16.mxu0 %v292
    %401 = vmatpush1.bf16.msra.mxu0 %v291
    %402 = vmatprep.subr.bf16.mxu0 %v294
    %403 = vmatpush1.bf16.msra.mxu0 %v293
    %404 = vmatprep.subr.bf16.mxu0 %v296
    %405 = vmatpush1.bf16.msra.mxu0 %v295
    %406 = vmatprep.subr.bf16.mxu0 %v298
    %407 = vmatpush1.bf16.msra.mxu0 %v297
    %408 = vmatprep.subr.bf16.mxu0 %v300
    %409 = vmatpush1.bf16.msra.mxu0 %v299
    %410 = vmatprep.mubr.bf16.mxu0 %v377
    %411 = vmatmul.mubr.bf16.gmra.mrb[0].mxu0 %v376
    %v412 = vpop.f32.mrb[0].mxu0
    %v413 = vadd.f32 %v166, %v412
    %v414 = vpop.f32.mrb[0].mxu0
    %v415 = vadd.f32 %v170, %v414
    %v416 = vpop.f32.mrb[0].mxu0
    %v417 = vpop.f32.mrb[0].mxu0
    %418 = vdwg.mxu0
    %v419 = vmax.f32 %v413, 0.0
    %v420 = vmax.f32 %v415, 0.0
    %v421 = vpack.c.bf16 %v419, %v419
    %v422 = vpack.c.bf16 %v420, %v420
    %423 = vmatprep.subr.bf16.mxu0 %v270
    %424 = vmatpush1.bf16.msra.mxu0 %v269
    %425 = vmatprep.subr.bf16.mxu0 %v272
    %426 = vmatpush1.bf16.msra.mxu0 %v271
    %427 = vmatprep.subr.bf16.mxu0 %v274
    %428 = vmatpush1.bf16.msra.mxu0 %v273
    %429 = vmatprep.subr.bf16.mxu0 %v276
    %430 = vmatpush1.bf16.msra.mxu0 %v275
    %431 = vmatprep.subr.bf16.mxu0 %v278
    %432 = vmatpush1.bf16.msra.mxu0 %v277
    %433 = vmatprep.subr.bf16.mxu0 %v280
    %434 = vmatpush1.bf16.msra.mxu0 %v279
    %435 = vmatprep.subr.bf16.mxu0 %v282
    %436 = vmatpush1.bf16.msra.mxu0 %v281
    %437 = vmatprep.subr.bf16.mxu0 %v284
    %438 = vmatpush1.bf16.msra.mxu0 %v283
    %439 = vmatprep.subr.bf16.mxu0 %v286
    %440 = vmatpush1.bf16.msra.mxu0 %v285
    %441 = vmatprep.subr.bf16.mxu0 %v288
    %442 = vmatpush1.bf16.msra.mxu0 %v287
    %443 = vmatprep.subr.bf16.mxu0 %v290
    %444 = vmatpush1.bf16.msra.mxu0 %v289
    %445 = vmatprep.subr.bf16.mxu0 %v292
    %446 = vmatpush1.bf16.msra.mxu0 %v291
    %447 = vmatprep.subr.bf16.mxu0 %v294
    %448 = vmatpush1.bf16.msra.mxu0 %v293
    %449 = vmatprep.subr.bf16.mxu0 %v296
    %450 = vmatpush1.bf16.msra.mxu0 %v295
    %451 = vmatprep.subr.bf16.mxu0 %v298
    %452 = vmatpush1.bf16.msra.mxu0 %v297
    %453 = vmatprep.subr.bf16.mxu0 %v300
    %454 = vmatpush1.bf16.msra.mxu0 %v299
    %455 = vmatprep.mubr.bf16.mxu0 %v422
    %456 = vmatmul.mubr.bf16.gmra.mrb[0].mxu0 %v421
    %v457 = vpop.f32.mrb[0].mxu0
    %v458 = vadd.f32 %v166, %v457
    %v459 = vpop.f32.mrb[0].mxu0
    %v460 = vadd.f32 %v170, %v459
    %v461 = vpop.f32.mrb[0].mxu0
    %v462 = vpop.f32.mrb[0].mxu0
    %463 = vdwg.mxu0
    %v464 = vmax.f32 %v458, 0.0
    %v465 = vmax.f32 %v460, 0.0
    %v466 = vpack.c.bf16 %v464, %v464
    %v467 = vpack.c.bf16 %v465, %v465
    %v468 = vld [vmem:[%s5] sm:$0xf]
    %v469 = vld [vmem:[%s5 + $0x4] sm:$0xf]
    %v470 = vld [vmem:[%s5 + $0x8] sm:$0xf]
    %v471 = vld [vmem:[%s5 + $0xc] sm:$0xf]
    %v472 = vld [vmem:[%s5 + $0x10] sm:$0xf]
    %v473 = vld [vmem:[%s5 + $0x14] sm:$0xf]
    %v474 = vld [vmem:[%s5 + $0x18] sm:$0xf]
    %v475 = vld [vmem:[%s5 + $0x1c] sm:$0xf]
    %v476 = vld [vmem:[%s5 + $0x20] sm:$0xf]
    %v477 = vld [vmem:[%s5 + $0x24] sm:$0xf]
    %v478 = vld [vmem:[%s5 + $0x28] sm:$0xf]
    %v479 = vld [vmem:[%s5 + $0x2c] sm:$0xf]
    %v480 = vld [vmem:[%s5 + $0x30] sm:$0xf]
    %v481 = vld [vmem:[%s5 + $0x34] sm:$0xf]
    %v482 = vld [vmem:[%s5 + $0x38] sm:$0xf]
    %v483 = vld [vmem:[%s5 + $0x3c] sm:$0xf]
    %v484 = vld [vmem:[%s5 + $0x40] sm:$0xf]
    %v485 = vld [vmem:[%s5 + $0x44] sm:$0xf]
    %v486 = vld [vmem:[%s5 + $0x48] sm:$0xf]
    %v487 = vld [vmem:[%s5 + $0x4c] sm:$0xf]
    %v488 = vld [vmem:[%s5 + $0x50] sm:$0xf]
    %v489 = vld [vmem:[%s5 + $0x54] sm:$0xf]
    %v490 = vld [vmem:[%s5 + $0x58] sm:$0xf]
    %v491 = vld [vmem:[%s5 + $0x5c] sm:$0xf]
    %v492 = vld [vmem:[%s5 + $0x60] sm:$0xf]
    %v493 = vld [vmem:[%s5 + $0x64] sm:$0xf]
    %v494 = vld [vmem:[%s5 + $0x68] sm:$0xf]
    %v495 = vld [vmem:[%s5 + $0x6c] sm:$0xf]
    %v496 = vld [vmem:[%s5 + $0x70] sm:$0xf]
    %v497 = vld [vmem:[%s5 + $0x74] sm:$0xf]
    %v498 = vld [vmem:[%s5 + $0x78] sm:$0xf]
    %v499 = vld [vmem:[%s5 + $0x7c] sm:$0xf]
    %v501 = vlaneseq
    %v502 = vshrl.u32 %v501, 7
    %v503 = vsub.s32 0, %v502
    %v504 = vrot.slane %v44, %v503
    %v538 = vunpack.c.l.b16 %v468
    %v539 = vunpack.c.l.b16 %v469
    %v540 = vunpack.c.l.b16 %v470
    %v541 = vunpack.c.l.b16 %v471
    %v542 = vunpack.c.l.b16 %v472
    %v543 = vunpack.c.l.b16 %v473
    %v544 = vunpack.c.l.b16 %v474
    %v545 = vunpack.c.l.b16 %v475
    %v546 = vunpack.c.l.b16 %v476
    %v547 = vunpack.c.l.b16 %v477
    %v548 = vunpack.c.l.b16 %v478
    %v549 = vunpack.c.l.b16 %v479
    %v550 = vunpack.c.l.b16 %v480
    %v551 = vunpack.c.l.b16 %v481
    %v552 = vunpack.c.l.b16 %v482
    %v553 = vunpack.c.l.b16 %v483
    %v554 = vunpack.c.l.b16 %v484
    %v555 = vunpack.c.l.b16 %v485
    %v556 = vunpack.c.l.b16 %v486
    %v557 = vunpack.c.l.b16 %v487
    %v558 = vunpack.c.l.b16 %v488
    %v559 = vunpack.c.l.b16 %v489
    %v560 = vunpack.c.l.b16 %v490
    %v561 = vunpack.c.l.b16 %v491
    %v562 = vunpack.c.l.b16 %v492
    %v563 = vunpack.c.l.b16 %v493
    %v564 = vunpack.c.l.b16 %v494
    %v565 = vunpack.c.l.b16 %v495
    %v566 = vunpack.c.l.b16 %v496
    %v567 = vunpack.c.l.b16 %v497
    %v568 = vunpack.c.l.b16 %v498
    %v569 = vunpack.c.l.b16 %v499
    %v570 = vpack.c.b16 %v539, %v538
    %v571 = vpack.c.b16 %v541, %v540
    %v572 = vpack.c.b16 %v543, %v542
    %v573 = vpack.c.b16 %v545, %v544
    %v574 = vpack.c.b16 %v547, %v546
    %v575 = vpack.c.b16 %v549, %v548
    %v576 = vpack.c.b16 %v551, %v550
    %v577 = vpack.c.b16 %v553, %v552
    %v578 = vpack.c.b16 %v555, %v554
    %v579 = vpack.c.b16 %v557, %v556
    %v580 = vpack.c.b16 %v559, %v558
    %v581 = vpack.c.b16 %v561, %v560
    %v582 = vpack.c.b16 %v563, %v562
    %v583 = vpack.c.b16 %v565, %v564
    %v584 = vpack.c.b16 %v567, %v566
    %v585 = vpack.c.b16 %v569, %v568
    %602 = vmatprep.subr.bf16.mxu0 0
    %603 = vmatpush1.bf16.msra.mxu0 %v570
    %604 = vmatprep.subr.bf16.mxu0 0
    %605 = vmatpush1.bf16.msra.mxu0 %v571
    %606 = vmatprep.subr.bf16.mxu0 0
    %607 = vmatpush1.bf16.msra.mxu0 %v572
    %608 = vmatprep.subr.bf16.mxu0 0
    %609 = vmatpush1.bf16.msra.mxu0 %v573
    %610 = vmatprep.subr.bf16.mxu0 0
    %611 = vmatpush1.bf16.msra.mxu0 %v574
    %612 = vmatprep.subr.bf16.mxu0 0
    %613 = vmatpush1.bf16.msra.mxu0 %v575
    %614 = vmatprep.subr.bf16.mxu0 0
    %615 = vmatpush1.bf16.msra.mxu0 %v576
    %616 = vmatprep.subr.bf16.mxu0 0
    %617 = vmatpush1.bf16.msra.mxu0 %v577
    %618 = vmatprep.subr.bf16.mxu0 0
    %619 = vmatpush1.bf16.msra.mxu0 %v578
    %620 = vmatprep.subr.bf16.mxu0 0
    %621 = vmatpush1.bf16.msra.mxu0 %v579
    %622 = vmatprep.subr.bf16.mxu0 0
    %623 = vmatpush1.bf16.msra.mxu0 %v580
    %624 = vmatprep.subr.bf16.mxu0 0
    %625 = vmatpush1.bf16.msra.mxu0 %v581
    %626 = vmatprep.subr.bf16.mxu0 0
    %627 = vmatpush1.bf16.msra.mxu0 %v582
    %628 = vmatprep.subr.bf16.mxu0 0
    %629 = vmatpush1.bf16.msra.mxu0 %v583
    %630 = vmatprep.subr.bf16.mxu0 0
    %631 = vmatpush1.bf16.msra.mxu0 %v584
    %632 = vmatprep.subr.bf16.mxu0 0
    %633 = vmatpush1.bf16.msra.mxu0 %v585
    %634 = vmatprep.mubr.bf16.mxu0 %v467
    %635 = vmatmul.mubr.bf16.gmra.mrb[0].mxu0 %v466
    %v636 = vpop.f32.mrb[0].mxu0
    %v637 = vadd.f32 %v504, %v636
    %v638 = vpop.f32.mrb[0].mxu0
    %v639 = vpop.f32.mrb[0].mxu0
    %v640 = vpop.f32.mrb[0].mxu0
    %641 = vdwg.mxu0
    %vm642 = vcmask 130048
    %643 = vst.msk [vmem:[#allocation5] sm:$0xff] %vm642, %v637
    // Predicated region
    $region34: #{tpu_custom_call.1} parent=1 // pred_check
      _
    $region35: #{tpu_custom_call.1} parent=1 // pred_check_branch
      %645 = sbr.rel (0) target = $region37
    $region36: #{tpu_custom_call.1} parent=1 // pred_region
      %s647 = ssub.s32 128, 128
      %648 = vsyncadd [#allocation4], %s647
      %s650 = sshll.u32 [#allocation5], 4
      %s651 = int_to_ptr.vmem [resolvable:$true] %s650
      %653 = dma.vmem_to_hbm [thread:$0]  %s651, 128, %s7, [#allocation4]
    $region37: #{tpu_custom_call.1} parent=1 // pred_fallthru
      _
    // Predicated region
    $region38: #{tpu_custom_call.1} parent=1 // pred_check
      _
    $region39: #{tpu_custom_call.1} parent=1 // pred_check_branch
      %655 = sbr.rel (0) target = $region41
    $region40: #{tpu_custom_call.1} parent=1 // pred_region
      %656 = dma.done [#allocation4], 128
    $region41: #{tpu_custom_call.1} parent=1 // pred_fallthru
      _
    %657 = vsyncpa [#allocation3], 1
    %658 = vsyncpa [#allocation4], 1

</llo_original>
